<compile_context>
chip_gen: v7x
topology: tpu7x:2x2x1
jax: 0.10.0
libtpu: 0.0.40
codegen_flags: <defaults>
</compile_context>

<pallas_src>
import math
import jax
import jax.numpy as jnp
from jax import lax
from jax.experimental import pallas as pl
from jax.experimental.pallas import tpu as pltpu


def _lstm_cell_kernel(x_ref, h_ref, c_ref, wih_ref, whh_ref, b_ref, st_ref):
    """One (H-tile, B-tile) block of the LSTM cell.

    x_ref:   (tb, I)        h_ref:   (tb, H)      c_ref: (tb, tn)
    wih_ref: (4, tn, I)     whh_ref: (4, tn, H)   b_ref: (4, tn) f32
    st_ref:  (2, tb, tn)    -- stack([hy, cy]) tile
    """
    _, tn, I = wih_ref.shape
    H = whh_ref.shape[2]

    x = x_ref[...]                       # (tb, I)
    h = h_ref[...]                       # (tb, H)
    c = c_ref[...].astype(jnp.float32)   # (tb, tn)
    b = b_ref[...]                       # (4, tn), already f32

    # Merge the (4, tn) gate dims (sublane-contiguous -> free reshape) so each
    # operand needs a single MXU matmul producing a (tb, 4*tn) gate slab.
    wih = wih_ref[...].reshape(4 * tn, I)
    whh = whh_ref[...].reshape(4 * tn, H)

    # Contract the K (last) dim of both operands: computes x @ w.T on the MXU
    # without any transposed weight copy.
    dn = (((1,), (1,)), ((), ()))
    g = lax.dot_general(x, wih, dn, preferred_element_type=jnp.float32)
    g = g + lax.dot_general(h, whh, dn, preferred_element_type=jnp.float32)

    # Gate slices at tn boundaries (lane-aligned when tn % 128 == 0).
    ingate     = jax.nn.sigmoid(g[:, 0 * tn:1 * tn] + b[0:1, :])
    forgetgate = jax.nn.sigmoid(g[:, 1 * tn:2 * tn] + b[1:2, :])
    cellgate   = jnp.tanh(      g[:, 2 * tn:3 * tn] + b[2:3, :])
    outgate    = jax.nn.sigmoid(g[:, 3 * tn:4 * tn] + b[3:4, :])

    cy = forgetgate * c + ingate * cellgate
    hy = outgate * jnp.tanh(cy)

    st_ref[0] = hy.astype(st_ref.dtype)   # stacked[0] = hy
    st_ref[1] = cy.astype(st_ref.dtype)   # stacked[1] = cy


def _vmem_capacity_bytes():
    """Physical VMEM of the current chip, with a conservative fallback."""
    try:
        cap = getattr(pltpu.get_tpu_info(), "vmem_capacity_bytes", None)
        if cap:
            return int(cap)
    except Exception:
        pass
    return 64 * 1024 * 1024   # v7x per-TensorCore VMEM (smallest current part)


def _select_tiles(B, I, H, x_item, w_item, block_b, block_h, budget):
    """Pick (tb, tn, weight_buffer_count) so the pipelined working set fits."""

    def fits(tb_, tn_, w_bufs_):
        weights = w_bufs_ * 4 * tn_ * (I + H) * w_item   # W_ih + W_hh tiles
        acts = 2 * tb_ * (I + H) * x_item                # x + hx (double buffered)
        cgate = 2 * tb_ * tn_ * x_item                   # cx
        outs = 2 * 2 * tb_ * tn_ * x_item                # stack([hy, cy])
        bias = 2 * 4 * tn_ * 4                           # fused f32 bias
        return weights + acts + cgate + outs + bias <= budget

    tb = B if B <= block_b else block_b
    nb = pl.cdiv(B, tb)
    # Weight tiles only change on the outer H axis; when the inner B axis is
    # iterated >= 2 times, single-buffering them costs one exposed DMA per
    # outer step (amortized over nb steps) and halves the dominant VMEM term.
    w_bufs = 1 if nb >= 2 else 2

    cands = sorted({c for c in (block_h, 512, 256, 128) if c <= block_h},
                   reverse=True) or [block_h]
    tn = None
    for cand in cands:
        t = H if H <= cand else cand
        if fits(tb, t, w_bufs):
            tn = t
            break
    if tn is None:                       # very large I/H: shrink everything
        tn = min(H, 128)
        w_bufs = 1
        while tb > 8 and not fits(tb, tn, w_bufs):
            tb = max(8, tb // 2)
    return tb, tn, w_bufs


def lstm_cell_forward(x, hx, cx, weight_ih, weight_hh, bias_ih, bias_hh,
                      *, block_b=512, block_h=512):
    """Pallas LSTMCell forward.

    x: (B, input_size); hx, cx: (B, H) (None -> zeros, like the module)
    weight_ih: (4H, input_size), weight_hh: (4H, H)   (PyTorch layout)
    bias_ih, bias_hh: (4H,)
    Returns (hy, stacked) with stacked = stack([hy, cy], axis=0) -> (2, B, H).
    """
    B, I = x.shape
    H = weight_hh.shape[1]
    dtype = x.dtype
    if hx is None:
        hx = jnp.zeros((B, H), dtype)
    if cx is None:
        cx = jnp.zeros((B, H), dtype)

    # Free reshapes (contiguous split of the leading 4H dim) — no HBM copies.
    wih = weight_ih.reshape(4, H, I)
    whh = weight_hh.reshape(4, H, H)
    # Fused bias kept in f32 (avoids a lossy bf16 round-trip when dtype=bf16).
    bias = (bias_ih.astype(jnp.float32)
            + bias_hh.astype(jnp.float32)).reshape(4, H)

    # --- VMEM-aware tile selection ------------------------------------------
    vmem_cap = _vmem_capacity_bytes()
    vmem_limit = min(int(vmem_cap * 0.85), vmem_cap - 8 * 1024 * 1024)
    vmem_limit = max(vmem_limit, 32 * 1024 * 1024)
    budget = int(vmem_limit * 0.9)       # headroom for Mosaic internal scratch

    itm = jnp.dtype(dtype).itemsize
    w_itm = jnp.dtype(weight_ih.dtype).itemsize
    tb, tn, w_bufs = _select_tiles(B, I, H, itm, w_itm, block_b, block_h, budget)

    nb = pl.cdiv(B, tb)
    nh = pl.cdiv(H, tn)
    # Feed both v7x TensorCores when the grid would otherwise be a single
    # block (negligible cost on single-core v5e/v6e).
    if nh == 1 and nb == 1 and H >= 256:
        half = (H + 1) // 2
        tn = max(128, ((half + 127) // 128) * 128)
        nh = pl.cdiv(H, tn)

    # --- Cost estimate (advisory) -------------------------------------------
    cost = pl.CostEstimate(
        flops=2 * B * (I + H) * 4 * H + 10 * B * H,
        transcendentals=8 * B * H,       # 3 sigmoids (~2 EUP ops each) + 2 tanh
        bytes_accessed=(4 * H * (I + H)) * w_itm     # weights: read once (resident over B)
        + nh * B * (I + H) * itm                     # x & hx: re-read for every H tile
        + B * H * itm                                # cx
        + 4 * H * 4                                  # fused f32 bias
        + 2 * B * H * itm,                           # stack([hy, cy]) writes
    )

    w_kwargs = dict(pipeline_mode=pl.Buffered(1)) if w_bufs == 1 else {}

    stacked = pl.pallas_call(
        _lstm_cell_kernel,
        out_shape=jax.ShapeDtypeStruct((2, B, H), dtype),
        # H/gate tiles on the OUTER axis -> weight block constant across the
        # inner B axis (Pallas skips re-DMA when the block index is unchanged).
        grid=(nh, nb),
        in_specs=[
            pl.BlockSpec((tb, I), lambda j, i: (i, 0)),                     # x
            pl.BlockSpec((tb, H), lambda j, i: (i, 0)),                     # hx
            pl.BlockSpec((tb, tn), lambda j, i: (i, j)),                    # cx
            pl.BlockSpec((4, tn, I), lambda j, i: (0, j, 0), **w_kwargs),   # W_ih
            pl.BlockSpec((4, tn, H), lambda j, i: (0, j, 0), **w_kwargs),   # W_hh
            pl.BlockSpec((4, tn), lambda j, i: (0, j)),                     # fused bias f32
        ],
        out_specs=pl.BlockSpec((2, tb, tn), lambda j, i: (0, i, j)),        # stack([hy,cy])
        compiler_params=pltpu.CompilerParams(
            dimension_semantics=("parallel", "parallel"),
            vmem_limit_bytes=vmem_limit,
        ),
        cost_estimate=cost,
    )(x, hx, cx, wih, whh, bias)

    # The module returns (hy, stack([hy, cy])).  hy is taken as a view of row
    # 0 so the kernel only writes 2*B*H output elements instead of 3*B*H.
    return stacked[0], stacked


def _reference_forward(x, hx, cx, weight_ih, weight_hh, bias_ih, bias_hh):
    gates = x @ weight_ih.T + hx @ weight_hh.T + bias_ih + bias_hh
    H = hx.shape[1]
    i = jax.nn.sigmoid(gates[:, 0 * H:1 * H])
    f = jax.nn.sigmoid(gates[:, 1 * H:2 * H])
    g = jnp.tanh(gates[:, 2 * H:3 * H])
    o = jax.nn.sigmoid(gates[:, 3 * H:4 * H])
    cy = f * cx + i * g
    hy = o * jnp.tanh(cy)
    return hy, jnp.stack([hy, cy], axis=0)


def _make_inputs(key, batch, input_size, hidden_size, dtype):
    k_x, k_h, k_c, k_wih, k_whh, k_bih, k_bhh = jax.random.split(key, 7)
    stdv = 1.0 / math.sqrt(hidden_size)   # matches reset_parameters()
    weight_ih = jax.random.uniform(k_wih, (4 * hidden_size, input_size),
                                   dtype, -stdv, stdv)
    weight_hh = jax.random.uniform(k_whh, (4 * hidden_size, hidden_size),
                                   dtype, -stdv, stdv)
    bias_ih = jax.random.uniform(k_bih, (4 * hidden_size,), dtype, -stdv, stdv)
    bias_hh = jax.random.uniform(k_bhh, (4 * hidden_size,), dtype, -stdv, stdv)
    x = jax.random.normal(k_x, (batch, input_size), dtype)
    hx = jax.random.normal(k_h, (batch, hidden_size), dtype)
    cx = jax.random.normal(k_c, (batch, hidden_size), dtype)
    return x, hx, cx, weight_ih, weight_hh, bias_ih, bias_hh


if __name__ == "__main__":
    dtype = jnp.float32

    # ---- case 1: small shapes consistent with the module (single block) ----
    args = _make_inputs(jax.random.PRNGKey(0), batch=2, input_size=16,
                        hidden_size=32, dtype=dtype)
    hy, stacked = lstm_cell_forward(*args)
    jax.block_until_ready((hy, stacked))
    hy_ref, stacked_ref = _reference_forward(*args)
    assert hy.shape == (2, 32)
    assert stacked.shape == (2, 2, 32)
    assert jnp.allclose(hy, hy_ref, atol=1e-5, rtol=1e-5)
    assert jnp.allclose(stacked, stacked_ref, atol=1e-5, rtol=1e-5)

    # ---- case 2: exercise the tiled grid path (2 gate tiles, aligned) ------
    args2 = _make_inputs(jax.random.PRNGKey(0), batch=8, input_size=128,
                         hidden_size=256, dtype=dtype)
    hy2, stacked2 = lstm_cell_forward(*args2, block_b=8, block_h=128)
    jax.block_until_ready((hy2, stacked2))
    hy2_ref, stacked2_ref = _reference_forward(*args2)
    assert jnp.allclose(hy2, hy2_ref, atol=1e-5, rtol=1e-5)
    assert jnp.allclose(stacked2, stacked2_ref, atol=1e-5, rtol=1e-5)

    # ---- case 3: unaligned shapes -> partial edge tiles on the H axis ------
    args3 = _make_inputs(jax.random.PRNGKey(0), batch=5, input_size=24,
                         hidden_size=192, dtype=dtype)
    hy3, stacked3 = lstm_cell_forward(*args3, block_h=128)
    jax.block_until_ready((hy3, stacked3))
    hy3_ref, stacked3_ref = _reference_forward(*args3)
    assert jnp.allclose(hy3, hy3_ref, atol=1e-5, rtol=1e-5)
    assert jnp.allclose(stacked3, stacked3_ref, atol=1e-5, rtol=1e-5)

    print("KERNEL_OK")
</pallas_src>

<mosaic_0001>
module attributes {stable_mosaic.version = 11 : i64} {
  func.func @_lstm_cell_kernel(%arg0: i32, %arg1: i32, %arg2: memref<2x16xf32, #tpu.memory_space<vmem>>, %arg3: memref<2x32xf32, #tpu.memory_space<vmem>>, %arg4: memref<2x32xf32, #tpu.memory_space<vmem>>, %arg5: memref<4x32x16xf32, #tpu.memory_space<vmem>>, %arg6: memref<4x32x32xf32, #tpu.memory_space<vmem>>, %arg7: memref<4x32xf32, #tpu.memory_space<vmem>>, %arg8: memref<2x2x32xf32, #tpu.memory_space<vmem>>) attributes {dimension_semantics = [#tpu.dimension_semantics<parallel>, #tpu.dimension_semantics<parallel>], iteration_bounds = array<i64: 1, 1>, scalar_prefetch = 0 : i64, scratch_operands = 0 : i64, tpu.core_type = #tpu.core_type<tc>, window_params = [{transform_indices = @transform_0, window_bounds = array<i64: 2, 16>}, {transform_indices = @transform_1, window_bounds = array<i64: 2, 32>}, {transform_indices = @transform_2, window_bounds = array<i64: 2, 32>}, {transform_indices = @transform_3, window_bounds = array<i64: 4, 32, 16>}, {transform_indices = @transform_4, window_bounds = array<i64: 4, 32, 32>}, {transform_indices = @transform_5, window_bounds = array<i64: 4, 32>}, {transform_indices = @transform_6, window_bounds = array<i64: 2, 2, 32>}]} {
    %c0 = arith.constant 0 : index
    %c0_0 = arith.constant 0 : index
    %0 = vector.load %arg2[%c0, %c0_0] : memref<2x16xf32, #tpu.memory_space<vmem>>, vector<2x16xf32>
    %c0_1 = arith.constant 0 : index
    %c0_2 = arith.constant 0 : index
    %1 = vector.load %arg3[%c0_1, %c0_2] : memref<2x32xf32, #tpu.memory_space<vmem>>, vector<2x32xf32>
    %c0_3 = arith.constant 0 : index
    %c0_4 = arith.constant 0 : index
    %2 = vector.load %arg4[%c0_3, %c0_4] : memref<2x32xf32, #tpu.memory_space<vmem>>, vector<2x32xf32>
    %c0_5 = arith.constant 0 : index
    %c0_6 = arith.constant 0 : index
    %3 = vector.load %arg7[%c0_5, %c0_6] : memref<4x32xf32, #tpu.memory_space<vmem>>, vector<4x32xf32>
    %c0_7 = arith.constant 0 : index
    %c0_8 = arith.constant 0 : index
    %c0_9 = arith.constant 0 : index
    %4 = vector.load %arg5[%c0_7, %c0_8, %c0_9] : memref<4x32x16xf32, #tpu.memory_space<vmem>>, vector<4x32x16xf32>
    %5 = vector.shape_cast %4 : vector<4x32x16xf32> to vector<128x16xf32>
    %c0_10 = arith.constant 0 : index
    %c0_11 = arith.constant 0 : index
    %c0_12 = arith.constant 0 : index
    %6 = vector.load %arg6[%c0_10, %c0_11, %c0_12] : memref<4x32x32xf32, #tpu.memory_space<vmem>>, vector<4x32x32xf32>
    %7 = vector.shape_cast %6 : vector<4x32x32xf32> to vector<128x32xf32>
    %cst = arith.constant dense<0.000000e+00> : vector<2x128xf32>
    %8 = tpu.matmul %0, %5, %cst {dimension_numbers = #tpu.dot_dimension_numbers<[1], [1], [0], [0], [0, 0, 1, 0], [], []>} : vector<2x16xf32>, vector<128x16xf32>, vector<2x128xf32> -> vector<2x128xf32>
    %cst_13 = arith.constant dense<0.000000e+00> : vector<2x128xf32>
    %9 = tpu.matmul %1, %7, %cst_13 {dimension_numbers = #tpu.dot_dimension_numbers<[1], [1], [0], [0], [0, 0, 1, 0], [], []>} : vector<2x32xf32>, vector<128x32xf32>, vector<2x128xf32> -> vector<2x128xf32>
    %10 = arith.addf %8, %9 : vector<2x128xf32>
    %11 = vector.extract_strided_slice %10 {offsets = [0, 0], sizes = [2, 32], strides = [1, 1]} : vector<2x128xf32> to vector<2x32xf32>
    %12 = vector.extract_strided_slice %3 {offsets = [0, 0], sizes = [1, 32], strides = [1, 1]} : vector<4x32xf32> to vector<1x32xf32>
    %13 = vector.broadcast %12 : vector<1x32xf32> to vector<2x32xf32>
    %14 = arith.addf %11, %13 : vector<2x32xf32>
    %15 = arith.negf %14 : vector<2x32xf32>
    %16 = math.exp %15 : vector<2x32xf32>
    %cst_14 = arith.constant 1.000000e+00 : f32
    %17 = vector.broadcast %cst_14 : f32 to vector<2x32xf32>
    %18 = arith.addf %17, %16 : vector<2x32xf32>
    %19 = arith.divf %17, %18 : vector<2x32xf32>
    %20 = vector.extract_strided_slice %10 {offsets = [0, 32], sizes = [2, 32], strides = [1, 1]} : vector<2x128xf32> to vector<2x32xf32>
    %21 = vector.extract_strided_slice %3 {offsets = [1, 0], sizes = [1, 32], strides = [1, 1]} : vector<4x32xf32> to vector<1x32xf32>
    %22 = vector.broadcast %21 : vector<1x32xf32> to vector<2x32xf32>
    %23 = arith.addf %20, %22 : vector<2x32xf32>
    %24 = arith.negf %23 : vector<2x32xf32>
    %25 = math.exp %24 : vector<2x32xf32>
    %cst_15 = arith.constant 1.000000e+00 : f32
    %26 = vector.broadcast %cst_15 : f32 to vector<2x32xf32>
    %27 = arith.addf %26, %25 : vector<2x32xf32>
    %28 = arith.divf %26, %27 : vector<2x32xf32>
    %29 = vector.extract_strided_slice %10 {offsets = [0, 64], sizes = [2, 32], strides = [1, 1]} : vector<2x128xf32> to vector<2x32xf32>
    %30 = vector.extract_strided_slice %3 {offsets = [2, 0], sizes = [1, 32], strides = [1, 1]} : vector<4x32xf32> to vector<1x32xf32>
    %31 = vector.broadcast %30 : vector<1x32xf32> to vector<2x32xf32>
    %32 = arith.addf %29, %31 : vector<2x32xf32>
    %33 = math.tanh %32 : vector<2x32xf32>
    %34 = vector.extract_strided_slice %10 {offsets = [0, 96], sizes = [2, 32], strides = [1, 1]} : vector<2x128xf32> to vector<2x32xf32>
    %35 = vector.extract_strided_slice %3 {offsets = [3, 0], sizes = [1, 32], strides = [1, 1]} : vector<4x32xf32> to vector<1x32xf32>
    %36 = vector.broadcast %35 : vector<1x32xf32> to vector<2x32xf32>
    %37 = arith.addf %34, %36 : vector<2x32xf32>
    %38 = arith.negf %37 : vector<2x32xf32>
    %39 = math.exp %38 : vector<2x32xf32>
    %cst_16 = arith.constant 1.000000e+00 : f32
    %40 = vector.broadcast %cst_16 : f32 to vector<2x32xf32>
    %41 = arith.addf %40, %39 : vector<2x32xf32>
    %42 = arith.divf %40, %41 : vector<2x32xf32>
    %43 = arith.mulf %28, %2 : vector<2x32xf32>
    %44 = arith.mulf %19, %33 : vector<2x32xf32>
    %45 = arith.addf %43, %44 : vector<2x32xf32>
    %46 = math.tanh %45 : vector<2x32xf32>
    %47 = arith.mulf %42, %46 : vector<2x32xf32>
    %c0_17 = arith.constant 0 : index
    %c0_18 = arith.constant 0 : index
    %c0_19 = arith.constant 0 : index
    %48 = vector.load %arg8[%c0_17, %c0_18, %c0_19] : memref<2x2x32xf32, #tpu.memory_space<vmem>>, vector<1x2x32xf32>
    %49 = vector.shape_cast %48 : vector<1x2x32xf32> to vector<2x32xf32>
    %50 = vector.shape_cast %47 : vector<2x32xf32> to vector<1x2x32xf32>
    tpu.vector_store %arg8[%c0_17, %c0_18, %c0_19], %50 {strides = array<i32>} : memref<2x2x32xf32, #tpu.memory_space<vmem>>, vector<1x2x32xf32>,
    %c1 = arith.constant 1 : index
    %c0_20 = arith.constant 0 : index
    %c0_21 = arith.constant 0 : index
    %51 = vector.load %arg8[%c1, %c0_20, %c0_21] : memref<2x2x32xf32, #tpu.memory_space<vmem>>, vector<1x2x32xf32>
    %52 = vector.shape_cast %51 : vector<1x2x32xf32> to vector<2x32xf32>
    %53 = vector.shape_cast %45 : vector<2x32xf32> to vector<1x2x32xf32>
    tpu.vector_store %arg8[%c1, %c0_20, %c0_21], %53 {strides = array<i32>} : memref<2x2x32xf32, #tpu.memory_space<vmem>>, vector<1x2x32xf32>,
    return
  }
  func.func @transform_0(%arg0: i32, %arg1: i32) -> (i32, i32) {
    %c0_i32 = arith.constant 0 : i32
    %c0_i32_0 = arith.constant 0 : i32
    return %arg1, %c0_i32 : i32, i32
  }
  func.func @transform_1(%arg0: i32, %arg1: i32) -> (i32, i32) {
    %c0_i32 = arith.constant 0 : i32
    %c0_i32_0 = arith.constant 0 : i32
    return %arg1, %c0_i32 : i32, i32
  }
  func.func @transform_2(%arg0: i32, %arg1: i32) -> (i32, i32) {
    %c0_i32 = arith.constant 0 : i32
    return %arg1, %arg0 : i32, i32
  }
  func.func @transform_3(%arg0: i32, %arg1: i32) -> (i32, i32, i32) {
    %c0_i32 = arith.constant 0 : i32
    %c0_i32_0 = arith.constant 0 : i32
    %c0_i32_1 = arith.constant 0 : i32
    return %c0_i32, %arg0, %c0_i32_0 : i32, i32, i32
  }
  func.func @transform_4(%arg0: i32, %arg1: i32) -> (i32, i32, i32) {
    %c0_i32 = arith.constant 0 : i32
    %c0_i32_0 = arith.constant 0 : i32
    %c0_i32_1 = arith.constant 0 : i32
    return %c0_i32, %arg0, %c0_i32_0 : i32, i32, i32
  }
  func.func @transform_5(%arg0: i32, %arg1: i32) -> (i32, i32) {
    %c0_i32 = arith.constant 0 : i32
    %c0_i32_0 = arith.constant 0 : i32
    return %c0_i32, %arg0 : i32, i32
  }
  func.func @transform_6(%arg0: i32, %arg1: i32) -> (i32, i32, i32) {
    %c0_i32 = arith.constant 0 : i32
    %c0_i32_0 = arith.constant 0 : i32
    return %c0_i32, %arg1, %arg0 : i32, i32, i32
  }
}

</mosaic_0001>

<llo_original>
// kernel: tpu_custom_call.1
$region0: #{tpu_custom_call.1}
  #allocation0 [shape = 'u32[]', space=smem, size = 0x4, offset = 0x4, fixed_abs, tag = 'smem constant byte address 0x4 - core index']
  #allocation1 [shape = 'u32[144,128]{1,0:T(1,128)}', space=vmem, size = 0x12000, scoped, tag = 'internal scratch']
  %s0 = inlined_call_operand.vmem [shape: f32[2,16], index: 0, kind: input, shape index: {}]
  %s1 = inlined_call_operand.vmem [shape: f32[2,32], index: 1, kind: input, shape index: {}]
  %s2 = inlined_call_operand.vmem [shape: f32[2,32], index: 2, kind: input, shape index: {}]
  %s3 = inlined_call_operand.vmem [shape: f32[4,32,16], index: 3, kind: input, shape index: {}]
  %s4 = inlined_call_operand.vmem [shape: f32[4,32,32], index: 4, kind: input, shape index: {}]
  %s5 = inlined_call_operand.vmem [shape: f32[4,32], index: 5, kind: input, shape index: {}]
  %s6 = inlined_call_operand.hbm [shape: f32[2,2,32], index: 6, kind: output, shape index: {}]
  %s7 = sld [smem:[#allocation0]]
  $region34: #{tpu_custom_call.1} parent=0
    _
  %s9 = ssub.s32 1, %s7
  %s10 = scalar_select 0, %s9, %s7
  $region1: #{tpu_custom_call.1} parent=0
    #allocation2 [shape = 'u8[2048]{0}', space=vmem, size = 0x800, scoped, tag = 'output window, operand 0, single buffered']
    #allocation3 [shape = 's32[1]{0}', space=sflag, size = 0x4, scoped, tag = 'scoped memory for tpu_custom_call.1']
    %11 = vsyncpa [#allocation3], 0
    // Predicated region
    $region2: #{tpu_custom_call.1} parent=1 // pred_check
      _
    $region3: #{tpu_custom_call.1} parent=1 // pred_check_branch
      %13 = sbr.rel (0) target = $region5
    $region4: #{tpu_custom_call.1} parent=1 // pred_region
      _
    $region5: #{tpu_custom_call.1} parent=1 // pred_fallthru
      _
    // Predicated region
    $region6: #{tpu_custom_call.1} parent=1 // pred_check
      _
    $region7: #{tpu_custom_call.1} parent=1 // pred_check_branch
      %15 = sbr.rel (0) target = $region9
    $region8: #{tpu_custom_call.1} parent=1 // pred_region
      _
    $region9: #{tpu_custom_call.1} parent=1 // pred_fallthru
      _
    // Predicated region
    $region10: #{tpu_custom_call.1} parent=1 // pred_check
      _
    $region11: #{tpu_custom_call.1} parent=1 // pred_check_branch
      %17 = sbr.rel (0) target = $region13
    $region12: #{tpu_custom_call.1} parent=1 // pred_region
      _
    $region13: #{tpu_custom_call.1} parent=1 // pred_fallthru
      _
    // Predicated region
    $region14: #{tpu_custom_call.1} parent=1 // pred_check
      _
    $region15: #{tpu_custom_call.1} parent=1 // pred_check_branch
      %19 = sbr.rel (0) target = $region17
    $region16: #{tpu_custom_call.1} parent=1 // pred_region
      _
    $region17: #{tpu_custom_call.1} parent=1 // pred_fallthru
      _
    // Predicated region
    $region18: #{tpu_custom_call.1} parent=1 // pred_check
      _
    $region19: #{tpu_custom_call.1} parent=1 // pred_check_branch
      %21 = sbr.rel (0) target = $region21
    $region20: #{tpu_custom_call.1} parent=1 // pred_region
      _
    $region21: #{tpu_custom_call.1} parent=1 // pred_fallthru
      _
    // Predicated region
    $region22: #{tpu_custom_call.1} parent=1 // pred_check
      _
    $region23: #{tpu_custom_call.1} parent=1 // pred_check_branch
      %23 = sbr.rel (0) target = $region25
    $region24: #{tpu_custom_call.1} parent=1 // pred_region
      _
    $region25: #{tpu_custom_call.1} parent=1 // pred_fallthru
      _
    %v24 = vld [vmem:[%s0] sm:$0x3]
    %v25 = vld [vmem:[%s1] sm:$0x3]
    %v26 = vld [vmem:[%s2] sm:$0x3]
    %v27 = vld [vmem:[%s5] sm:$0xf]
    %v28 = vld [vmem:[%s3] sm:$0xff]
    %v29 = vld [vmem:[%s3 + $0x8] sm:$0xff]
    %v30 = vld [vmem:[%s3 + $0x10] sm:$0xff]
    %v31 = vld [vmem:[%s3 + $0x18] sm:$0xff]
    %v32 = vld [vmem:[%s3 + $0x20] sm:$0xff]
    %v33 = vld [vmem:[%s3 + $0x28] sm:$0xff]
    %v34 = vld [vmem:[%s3 + $0x30] sm:$0xff]
    %v35 = vld [vmem:[%s3 + $0x38] sm:$0xff]
    %v36 = vld [vmem:[%s3 + $0x40] sm:$0xff]
    %v37 = vld [vmem:[%s3 + $0x48] sm:$0xff]
    %v38 = vld [vmem:[%s3 + $0x50] sm:$0xff]
    %v39 = vld [vmem:[%s3 + $0x58] sm:$0xff]
    %v40 = vld [vmem:[%s3 + $0x60] sm:$0xff]
    %v41 = vld [vmem:[%s3 + $0x68] sm:$0xff]
    %v42 = vld [vmem:[%s3 + $0x70] sm:$0xff]
    %v43 = vld [vmem:[%s3 + $0x78] sm:$0xff]
    %v44 = vld [vmem:[%s4] sm:$0xff]
    %v45 = vld [vmem:[%s4 + $0x8] sm:$0xff]
    %v46 = vld [vmem:[%s4 + $0x10] sm:$0xff]
    %v47 = vld [vmem:[%s4 + $0x18] sm:$0xff]
    %v48 = vld [vmem:[%s4 + $0x20] sm:$0xff]
    %v49 = vld [vmem:[%s4 + $0x28] sm:$0xff]
    %v50 = vld [vmem:[%s4 + $0x30] sm:$0xff]
    %v51 = vld [vmem:[%s4 + $0x38] sm:$0xff]
    %v52 = vld [vmem:[%s4 + $0x40] sm:$0xff]
    %v53 = vld [vmem:[%s4 + $0x48] sm:$0xff]
    %v54 = vld [vmem:[%s4 + $0x50] sm:$0xff]
    %v55 = vld [vmem:[%s4 + $0x58] sm:$0xff]
    %v56 = vld [vmem:[%s4 + $0x60] sm:$0xff]
    %v57 = vld [vmem:[%s4 + $0x68] sm:$0xff]
    %v58 = vld [vmem:[%s4 + $0x70] sm:$0xff]
    %v59 = vld [vmem:[%s4 + $0x78] sm:$0xff]
    %vm60 = vcmask 261120
    %v62 = vsel %vm60, %v25, 0
    %v65 = vsel %vm60, %v44, 0
    %v68 = vsel %vm60, %v45, 0
    %v71 = vsel %vm60, %v46, 0
    %v74 = vsel %vm60, %v47, 0
    %v77 = vsel %vm60, %v48, 0
    %v80 = vsel %vm60, %v49, 0
    %v83 = vsel %vm60, %v50, 0
    %v86 = vsel %vm60, %v51, 0
    %v89 = vsel %vm60, %v52, 0
    %v92 = vsel %vm60, %v53, 0
    %v95 = vsel %vm60, %v54, 0
    %v98 = vsel %vm60, %v55, 0
    %v101 = vsel %vm60, %v56, 0
    %v104 = vsel %vm60, %v57, 0
    %v107 = vsel %vm60, %v58, 0
    %v110 = vsel %vm60, %v59, 0
    %112 = vmatprep.subr.mxu0 0.0
    %113 = vmatpush1.xpose.msra.mxu0 %v65
    %114 = vmatprep.subr.mxu0 0.0
    %115 = vmatpush1.xpose.msra.mxu0 %v68
    %116 = vmatprep.subr.mxu0 0.0
    %117 = vmatpush1.xpose.msra.mxu0 %v71
    %118 = vmatprep.subr.mxu0 0.0
    %119 = vmatpush1.xpose.msra.mxu0 %v74
    %120 = vmatprep.subr.mxu0 0.0
    %121 = vmatpush1.xpose.msra.mxu0 %v77
    %122 = vmatprep.subr.mxu0 0.0
    %123 = vmatpush1.xpose.msra.mxu0 %v80
    %124 = vmatprep.subr.mxu0 0.0
    %125 = vmatpush1.xpose.msra.mxu0 %v83
    %126 = vmatprep.subr.mxu0 0.0
    %127 = vmatpush1.xpose.msra.mxu0 %v86
    %128 = vmatprep.subr.mxu0 0.0
    %129 = vmatpush1.xpose.msra.mxu0 %v89
    %130 = vmatprep.subr.mxu0 0.0
    %131 = vmatpush1.xpose.msra.mxu0 %v92
    %132 = vmatprep.subr.mxu0 0.0
    %133 = vmatpush1.xpose.msra.mxu0 %v95
    %134 = vmatprep.subr.mxu0 0.0
    %135 = vmatpush1.xpose.msra.mxu0 %v98
    %136 = vmatprep.subr.mxu0 0.0
    %137 = vmatpush1.xpose.msra.mxu0 %v101
    %138 = vmatprep.subr.mxu0 0.0
    %139 = vmatpush1.xpose.msra.mxu0 %v104
    %140 = vmatprep.subr.mxu0 0.0
    %141 = vmatpush1.xpose.msra.mxu0 %v107
    %142 = vmatprep.subr.mxu0 0.0
    %143 = vmatpush1.xpose.msra.mxu0 %v110
    %144 = vmatprep.subr.mxu0 0.0
    %145 = vmatpush1.xpose.msra.mxu0 0.0
    %146 = vmatprep.subr.mxu0 0.0
    %147 = vmatpush1.xpose.msra.mxu0 0.0
    %148 = vmatprep.subr.mxu0 0.0
    %149 = vmatpush1.xpose.msra.mxu0 0.0
    %150 = vmatprep.subr.mxu0 0.0
    %151 = vmatpush1.xpose.msra.mxu0 0.0
    %152 = vmatprep.subr.mxu0 0.0
    %153 = vmatpush1.xpose.msra.mxu0 0.0
    %154 = vmatprep.subr.mxu0 0.0
    %155 = vmatpush1.xpose.msra.mxu0 0.0
    %156 = vmatprep.subr.mxu0 0.0
    %157 = vmatpush1.xpose.msra.mxu0 0.0
    %158 = vmatprep.subr.mxu0 0.0
    %159 = vmatpush1.xpose.msra.mxu0 0.0
    %160 = vmatprep.subr.mxu0 0.0
    %161 = vmatpush1.xpose.msra.mxu0 0.0
    %162 = vmatprep.subr.mxu0 0.0
    %163 = vmatpush1.xpose.msra.mxu0 0.0
    %164 = vmatprep.subr.mxu0 0.0
    %165 = vmatpush1.xpose.msra.mxu0 0.0
    %166 = vmatprep.subr.mxu0 0.0
    %167 = vmatpush1.xpose.msra.mxu0 0.0
    %168 = vmatprep.subr.mxu0 0.0
    %169 = vmatpush1.xpose.msra.mxu0 0.0
    %170 = vmatprep.subr.mxu0 0.0
    %171 = vmatpush1.xpose.msra.mxu0 0.0
    %172 = vmatprep.subr.mxu0 0.0
    %173 = vmatpush1.xpose.msra.mxu0 0.0
    %174 = vmatprep.subr.mxu0 0.0
    %175 = vmatpush1.xpose.msra.mxu0 0.0
    %176 = vmatprep.mubr.f32.mxu0 0.0
    %177 = vmatmul.mubr.f32.gmra.mrb[0].mxu0 %v62
    %v178 = vpop.f32.mrb[0].mxu0
    %v179 = vadd.f32 0.0, %v178
    %v180 = vpop.f32.mrb[0].mxu0
    %181 = vdwg.mxu0
    %vm182 = vcmask 130048
    %v184 = vsel %vm182, %v24, 0
    %v187 = vsel %vm182, %v28, 0
    %v190 = vsel %vm182, %v29, 0
    %v193 = vsel %vm182, %v30, 0
    %v196 = vsel %vm182, %v31, 0
    %v199 = vsel %vm182, %v32, 0
    %v202 = vsel %vm182, %v33, 0
    %v205 = vsel %vm182, %v34, 0
    %v208 = vsel %vm182, %v35, 0
    %v211 = vsel %vm182, %v36, 0
    %v214 = vsel %vm182, %v37, 0
    %v217 = vsel %vm182, %v38, 0
    %v220 = vsel %vm182, %v39, 0
    %v223 = vsel %vm182, %v40, 0
    %v226 = vsel %vm182, %v41, 0
    %v229 = vsel %vm182, %v42, 0
    %v232 = vsel %vm182, %v43, 0
    %234 = vmatprep.subr.mxu0 0.0
    %235 = vmatpush1.xpose.msra.mxu0 %v187
    %236 = vmatprep.subr.mxu0 0.0
    %237 = vmatpush1.xpose.msra.mxu0 %v190
    %238 = vmatprep.subr.mxu0 0.0
    %239 = vmatpush1.xpose.msra.mxu0 %v193
    %240 = vmatprep.subr.mxu0 0.0
    %241 = vmatpush1.xpose.msra.mxu0 %v196
    %242 = vmatprep.subr.mxu0 0.0
    %243 = vmatpush1.xpose.msra.mxu0 %v199
    %244 = vmatprep.subr.mxu0 0.0
    %245 = vmatpush1.xpose.msra.mxu0 %v202
    %246 = vmatprep.subr.mxu0 0.0
    %247 = vmatpush1.xpose.msra.mxu0 %v205
    %248 = vmatprep.subr.mxu0 0.0
    %249 = vmatpush1.xpose.msra.mxu0 %v208
    %250 = vmatprep.subr.mxu0 0.0
    %251 = vmatpush1.xpose.msra.mxu0 %v211
    %252 = vmatprep.subr.mxu0 0.0
    %253 = vmatpush1.xpose.msra.mxu0 %v214
    %254 = vmatprep.subr.mxu0 0.0
    %255 = vmatpush1.xpose.msra.mxu0 %v217
    %256 = vmatprep.subr.mxu0 0.0
    %257 = vmatpush1.xpose.msra.mxu0 %v220
    %258 = vmatprep.subr.mxu0 0.0
    %259 = vmatpush1.xpose.msra.mxu0 %v223
    %260 = vmatprep.subr.mxu0 0.0
    %261 = vmatpush1.xpose.msra.mxu0 %v226
    %262 = vmatprep.subr.mxu0 0.0
    %263 = vmatpush1.xpose.msra.mxu0 %v229
    %264 = vmatprep.subr.mxu0 0.0
    %265 = vmatpush1.xpose.msra.mxu0 %v232
    %266 = vmatprep.subr.mxu0 0.0
    %267 = vmatpush1.xpose.msra.mxu0 0.0
    %268 = vmatprep.subr.mxu0 0.0
    %269 = vmatpush1.xpose.msra.mxu0 0.0
    %270 = vmatprep.subr.mxu0 0.0
    %271 = vmatpush1.xpose.msra.mxu0 0.0
    %272 = vmatprep.subr.mxu0 0.0
    %273 = vmatpush1.xpose.msra.mxu0 0.0
    %274 = vmatprep.subr.mxu0 0.0
    %275 = vmatpush1.xpose.msra.mxu0 0.0
    %276 = vmatprep.subr.mxu0 0.0
    %277 = vmatpush1.xpose.msra.mxu0 0.0
    %278 = vmatprep.subr.mxu0 0.0
    %279 = vmatpush1.xpose.msra.mxu0 0.0
    %280 = vmatprep.subr.mxu0 0.0
    %281 = vmatpush1.xpose.msra.mxu0 0.0
    %282 = vmatprep.subr.mxu0 0.0
    %283 = vmatpush1.xpose.msra.mxu0 0.0
    %284 = vmatprep.subr.mxu0 0.0
    %285 = vmatpush1.xpose.msra.mxu0 0.0
    %286 = vmatprep.subr.mxu0 0.0
    %287 = vmatpush1.xpose.msra.mxu0 0.0
    %288 = vmatprep.subr.mxu0 0.0
    %289 = vmatpush1.xpose.msra.mxu0 0.0
    %290 = vmatprep.subr.mxu0 0.0
    %291 = vmatpush1.xpose.msra.mxu0 0.0
    %292 = vmatprep.subr.mxu0 0.0
    %293 = vmatpush1.xpose.msra.mxu0 0.0
    %294 = vmatprep.subr.mxu0 0.0
    %295 = vmatpush1.xpose.msra.mxu0 0.0
    %296 = vmatprep.subr.mxu0 0.0
    %297 = vmatpush1.xpose.msra.mxu0 0.0
    %298 = vmatprep.mubr.f32.mxu0 0.0
    %299 = vmatmul.mubr.f32.gmra.mrb[0].mxu0 %v184
    %v300 = vpop.f32.mrb[0].mxu0
    %v301 = vadd.f32 %v179, %v300
    %v302 = vpop.f32.mrb[0].mxu0
    %303 = vdwg.mxu0
    %v304 = vlaneseq
    %v305 = vshrl.u32 %v304, 7
    %v306 = vsub.s32 0, %v305
    %v307 = vrot.slane %v27, %v306
    %v308 = vadd.f32 %v301, %v307
    %v309 = vxor.u32 %v308, 2147483648
    %v310 = vmul.f32 %v309, 1.442695
    %v311 = vpow.pop %v310
    %v312 = vadd.f32 %v311, 1.0
    %v313 = vrcp.pop %v312
    %v314 = vmul.f32 1.0, %v313
    %v315 = vlaneseq
    %v316 = vshrl.u32 %v315, 7
    %v317 = vsub.s32 1, %v316
    %v318 = vrot.slane %v27, %v317
    %320 = vrot.lane.b32.xlu0 %v318, 32
    %v321 = vpop.permute.xlu0 %320
    %v323 = vadd.f32 %v301, %v321
    %v324 = vxor.u32 %v323, 2147483648
    %v325 = vmul.f32 %v324, 1.442695
    %v326 = vpow.pop %v325
    %v327 = vadd.f32 %v326, 1.0
    %v328 = vrcp.pop %v327
    %v329 = vmul.f32 1.0, %v328
    %v330 = vlaneseq
    %v331 = vshrl.u32 %v330, 7
    %v332 = vsub.s32 2, %v331
    %v333 = vrot.slane %v27, %v332
    %335 = vrot.lane.b32.xlu0 %v333, 64
    %v336 = vpop.permute.xlu0 %335
    %v338 = vadd.f32 %v301, %v336
    %v339 = vtanh.pop %v338
    %v340 = vlaneseq
    %v341 = vshrl.u32 %v340, 7
    %v342 = vsub.s32 3, %v341
    %v343 = vrot.slane %v27, %v342
    %345 = vrot.lane.b32.xlu0 %v343, 96
    %v346 = vpop.permute.xlu0 %345
    %v348 = vadd.f32 %v301, %v346
    %v349 = vxor.u32 %v348, 2147483648
    %v350 = vmul.f32 %v349, 1.442695
    %v351 = vpow.pop %v350
    %v352 = vadd.f32 %v351, 1.0
    %v353 = vrcp.pop %v352
    %v354 = vmul.f32 1.0, %v353
    %356 = vrot.lane.b32.xlu0 %v26, 32
    %v357 = vpop.permute.xlu0 %356
    %v359 = vmul.f32 %v329, %v357
    %361 = vrot.lane.b32.xlu0 %v339, 64
    %v362 = vpop.permute.xlu0 %361
    %v364 = vmul.f32 %v314, %v362
    %366 = vrot.lane.b32.xlu0 %v364, 32
    %v367 = vpop.permute.xlu0 %366
    %v369 = vadd.f32 %v359, %v367
    %v370 = vtanh.pop %v369
    %372 = vrot.lane.b32.xlu0 %v370, 64
    %v373 = vpop.permute.xlu0 %372
    %v375 = vmul.f32 %v354, %v373
    %377 = vrot.lane.b32.xlu0 %v375, 32
    %v378 = vpop.permute.xlu0 %377
    %vm380 = vcmask 254976
    %381 = vst.msk [vmem:[#allocation2] sm:$0x3] %vm380, %v378
    %383 = vrot.lane.b32.xlu0 %v369, 96
    %v384 = vpop.permute.xlu0 %383
    %s386 = scalar_lea.vmem [#allocation2], 2
    %387 = vst.msk [vmem:[%s386] sm:$0x3] %vm380, %v384
    // Predicated region
    $region26: #{tpu_custom_call.1} parent=1 // pred_check
      _
    $region27: #{tpu_custom_call.1} parent=1 // pred_check_branch
      %389 = sbr.rel (0) target = $region29
    $region28: #{tpu_custom_call.1} parent=1 // pred_region
      %s391 = ssub.s32 64, 64
      %392 = vsyncadd [#allocation3], %s391
      %s393 = sshll.u32 [#allocation2], 4
      %s394 = int_to_ptr.vmem [resolvable:$true] %s393
      %399 = dma.vmem_to_hbm [thread:$0]  %s394, 64, %s6, [#allocation3], 32, 32, 2
    $region29: #{tpu_custom_call.1} parent=1 // pred_fallthru
      _
    // Predicated region
    $region30: #{tpu_custom_call.1} parent=1 // pred_check
      _
    $region31: #{tpu_custom_call.1} parent=1 // pred_check_branch
      %401 = sbr.rel (0) target = $region33
    $region32: #{tpu_custom_call.1} parent=1 // pred_region
      %402 = dma.done [#allocation3], 64
    $region33: #{tpu_custom_call.1} parent=1 // pred_fallthru
      _
    %403 = vsyncpa [#allocation3], 1

</llo_original>
